<compile_context>
chip_gen: v5e
topology: v5e:2x2
jax: 0.10.0
libtpu: 0.0.40
codegen_flags: <defaults>
</compile_context>

<pallas_src>
import functools
import math

import jax
import jax.numpy as jnp
from jax.experimental import pallas as pl
from jax.experimental.pallas import tpu as pltpu


def _round_up(n, m):
    return ((n + m - 1) // m) * m


def _generator_kernel(*refs, n_mlp_layers):
    # refs layout: x, (w_i, b_i) per MLP layer, head_w, head_b, head_out
    x_ref = refs[0]
    mlp_refs = refs[1:1 + 2 * n_mlp_layers]
    wh_ref, bh_ref = refs[1 + 2 * n_mlp_layers:3 + 2 * n_mlp_layers]
    out_ref = refs[3 + 2 * n_mlp_layers]

    h = x_ref[...].astype(jnp.float32)
    for l in range(n_mlp_layers):
        w_ref = mlp_refs[2 * l]
        b_ref = mlp_refs[2 * l + 1]
        # bf16 MXU matmul with f32 accumulation; bias add + tanh stay in f32.
        h = jnp.dot(h.astype(w_ref.dtype), w_ref[...],
                    preferred_element_type=jnp.float32) + b_ref[...]
        h = jnp.tanh(h)  # EUP; f32 epilogue (no bf16 VPU/EUP on v5e)
        # Dropout(p=dropout) in eval / rate-0 mode is identity.

    # Single fused head matmul (edges || nodes), lane-dense output columns.
    out = jnp.dot(h.astype(wh_ref.dtype), wh_ref[...],
                  preferred_element_type=jnp.float32) + bh_ref[...]
    out_ref[...] = out.astype(out_ref.dtype)


def _choose_tb(batch):
    # Small batch: one grid step (kernel is launch/DMA-overhead bound there).
    if batch <= 128:
        return batch
    # Large batch: largest multiple-of-8 divisor of B that is <= 256 keeps the
    # output tile a few hundred KB and avoids the spill-bound regime.
    for cand in range(min(256, batch), 7, -1):
        if batch % cand == 0 and cand % 8 == 0:
            return cand
    return batch  # no nice divisor -> single step


def generator_forward(x, mlp_params, head_w, head_b, *, tb=None):
    """Fused forward. Returns the padded head output of shape (B, evv_pad + vn_pad)."""
    B, z_dim = x.shape
    n_layers = len(mlp_params)
    c_last_pad, total = head_w.shape

    if tb is None:
        tb = _choose_tb(B)
    assert B % tb == 0, "batch must be divisible by tb"
    grid_steps = B // tb

    const_map = lambda i: (0, 0)
    flat_inputs = [x]
    in_specs = [pl.BlockSpec((tb, z_dim), lambda i: (i, 0))]
    for (w, b) in mlp_params:
        flat_inputs += [w, b.reshape(1, -1)]
        in_specs += [pl.BlockSpec(w.shape, const_map),
                     pl.BlockSpec((1, b.shape[0]), const_map)]
    flat_inputs += [head_w, head_b.reshape(1, total)]
    in_specs += [pl.BlockSpec((c_last_pad, total), const_map),
                 pl.BlockSpec((1, total), const_map)]

    out_shape = jax.ShapeDtypeStruct((B, total), x.dtype)
    out_specs = pl.BlockSpec((tb, total), lambda i: (i, 0))

    # Advisory cost estimate so XLA schedules surrounding ops sensibly.
    dims = [z_dim] + [w.shape[1] for (w, _) in mlp_params]
    flops = 2 * B * (sum(dims[i] * dims[i + 1] for i in range(len(dims) - 1))
                     + c_last_pad * total)
    bytes_accessed = int(
        x.size * x.dtype.itemsize
        + sum(w.size * w.dtype.itemsize + b.size * 4 for (w, b) in mlp_params)
        + head_w.size * head_w.dtype.itemsize + head_b.size * 4
        + B * total * x.dtype.itemsize)
    cost = pl.CostEstimate(flops=flops,
                           transcendentals=B * sum(dims[1:]),
                           bytes_accessed=bytes_accessed)

    # Megacore sharding of the batch axis only pays once each core gets real work;
    # otherwise it doubles the (dominant) weight DMA traffic.
    semantics = "parallel" if (grid_steps > 1 and tb >= 128) else "arbitrary"

    kernel = functools.partial(_generator_kernel, n_mlp_layers=n_layers)
    return pl.pallas_call(
        kernel,
        out_shape=out_shape,
        grid_spec=pltpu.PrefetchScalarGridSpec(
            num_scalar_prefetch=0,
            grid=(grid_steps,),
            in_specs=in_specs,
            out_specs=out_specs,
        ),
        compiler_params=pltpu.CompilerParams(dimension_semantics=(semantics,)),
        cost_estimate=cost,
    )(*flat_inputs)


class GanMoleculeGeneratorPallas:
    """JAX/Pallas port of jaqpotpy _GanMoleculeGenerator (eval-mode forward)."""

    def __init__(self, conv_dims, z_dim, vertexes, edges, nodes, dropout, key=None):
        assert dropout == 0.0, "only eval-mode / rate-0 dropout supported"
        # TODO(synk): training-mode dropout (random masking) is not implemented.
        self.z_dim = z_dim
        self.vertexes = vertexes
        self.edges = edges
        self.nodes = nodes
        if key is None:
            key = jax.random.PRNGKey(0)

        def linear_init(key, c_in, c_out):
            kw, kb = jax.random.split(key)
            bound = 1.0 / math.sqrt(c_in)
            w = jax.random.uniform(kw, (c_in, c_out), jnp.float32, -bound, bound)
            b = jax.random.uniform(kb, (c_out,), jnp.float32, -bound, bound)
            return w, b

        # ---- original (reference) f32 parameters, PyTorch-equivalent semantics ----
        self.mlp_params = []
        for c0, c1 in zip([z_dim] + list(conv_dims[:-1]), conv_dims):
            key, sub = jax.random.split(key)
            self.mlp_params.append(linear_init(sub, c0, c1))

        c_last = conv_dims[-1]
        E, V, N = edges, vertexes, nodes
        evv, vn = E * V * V, V * N
        key, ke = jax.random.split(key)
        self.edges_w, self.edges_b = linear_init(ke, c_last, evv)
        key, kn = jax.random.split(key)
        self.nodes_w, self.nodes_b = linear_init(kn, c_last, vn)

        # ---- kernel-side MLP params: widths padded to multiples of 128, bf16 weights ----
        pad_dims = [_round_up(c, 128) for c in conv_dims]
        self.kernel_mlp = []
        prev_pad = z_dim
        for (w, b), c_out_pad in zip(self.mlp_params, pad_dims):
            c_in, c_out = w.shape
            w_pad = jnp.zeros((prev_pad, c_out_pad), jnp.float32).at[:c_in, :c_out].set(w)
            b_pad = jnp.zeros((c_out_pad,), jnp.float32).at[:c_out].set(b)
            # padded columns: tanh(0 + 0) = 0 and downstream rows are zero -> exact.
            self.kernel_mlp.append((w_pad.astype(jnp.bfloat16), b_pad))
            prev_pad = c_out_pad
        c_last_pad = prev_pad

        # ---- fold symmetrization over (V,V) and the (0,2,3,1) permute into the edge head ----
        #   out[:, i, j, e] = (raw[:, e, i, j] + raw[:, e, j, i]) / 2
        we4 = self.edges_w.reshape(c_last, E, V, V)
        we_sym = 0.5 * (we4 + jnp.swapaxes(we4, -1, -2))
        we_folded = jnp.transpose(we_sym, (0, 2, 3, 1)).reshape(c_last, evv)
        be4 = self.edges_b.reshape(E, V, V)
        be_sym = 0.5 * (be4 + jnp.swapaxes(be4, -1, -2))
        be_folded = jnp.transpose(be_sym, (1, 2, 0)).reshape(evv)

        # ---- fuse both heads into one lane-dense padded matrix ----
        self.evv, self.vn = evv, vn
        self.evv_pad = _round_up(evv, 128)   # 405 -> 512
        self.vn_pad = _round_up(vn, 128)     # 45  -> 128
        total = self.evv_pad + self.vn_pad
        head_w = jnp.zeros((c_last_pad, total), jnp.float32)
        head_w = head_w.at[:c_last, :evv].set(we_folded)
        head_w = head_w.at[:c_last, self.evv_pad:self.evv_pad + vn].set(self.nodes_w)
        head_b = jnp.zeros((total,), jnp.float32)
        head_b = head_b.at[:evv].set(be_folded)
        head_b = head_b.at[self.evv_pad:self.evv_pad + vn].set(self.nodes_b)
        self.head_w = head_w.astype(jnp.bfloat16)
        self.head_b = head_b  # biases tiny -> keep f32 for accuracy

    def __call__(self, x, tb=None):
        B = x.shape[0]
        out = generator_forward(x, self.kernel_mlp, self.head_w, self.head_b, tb=tb)
        edges_logits = out[:, :self.evv].reshape(B, self.vertexes, self.vertexes, self.edges)
        nodes_logits = out[:, self.evv_pad:self.evv_pad + self.vn].reshape(
            B, self.vertexes, self.nodes)
        return edges_logits, nodes_logits


if __name__ == "__main__":
    # Small, MolGAN-like config: z_dim=32, conv_dims=[64,128,128], V=9, E=5, N=5.
    z_dim = 32
    conv_dims = [64, 128, 128]
    vertexes, edges, nodes = 9, 5, 5
    batch = 16  # B <= 128 -> single grid step (tb = B), no megacore split

    model = GanMoleculeGeneratorPallas(conv_dims, z_dim, vertexes, edges, nodes,
                                       dropout=0.0, key=jax.random.PRNGKey(0))

    kx = jax.random.split(jax.random.PRNGKey(0), 2)[1]
    x = jax.random.normal(kx, (batch, z_dim), jnp.float32)

    edges_logits, nodes_logits = model(x)
    edges_logits = jax.block_until_ready(edges_logits)
    nodes_logits = jax.block_until_ready(nodes_logits)

    # Pure-JAX f32 reference mirroring the PyTorch forward (original, unfolded weights).
    h = x
    for (w, b) in model.mlp_params:
        h = jnp.tanh(h @ w + b)
    e_ref = (h @ model.edges_w + model.edges_b).reshape(batch, edges, vertexes, vertexes)
    e_ref = (e_ref + jnp.swapaxes(e_ref, -1, -2)) / 2.0
    e_ref = jnp.transpose(e_ref, (0, 2, 3, 1))  # (B, V, V, E)
    n_ref = (h @ model.nodes_w + model.nodes_b).reshape(batch, vertexes, nodes)

    assert edges_logits.shape == (batch, vertexes, vertexes, edges)
    assert nodes_logits.shape == (batch, vertexes, nodes)
    # bf16 weights -> tolerance loosened vs the f32 reference.
    assert jnp.allclose(edges_logits, e_ref, atol=2e-2, rtol=2e-2)
    assert jnp.allclose(nodes_logits, n_ref, atol=2e-2, rtol=2e-2)

    print("KERNEL_OK")
</pallas_src>

<mosaic_0001>
module attributes {stable_mosaic.version = 11 : i64} {
  func.func @_generator_kernel(%arg0: i32, %arg1: memref<16x32xf32, #tpu.memory_space<vmem>>, %arg2: memref<32x128xbf16, #tpu.memory_space<vmem>>, %arg3: memref<1x128xf32, #tpu.memory_space<vmem>>, %arg4: memref<128x128xbf16, #tpu.memory_space<vmem>>, %arg5: memref<1x128xf32, #tpu.memory_space<vmem>>, %arg6: memref<128x128xbf16, #tpu.memory_space<vmem>>, %arg7: memref<1x128xf32, #tpu.memory_space<vmem>>, %arg8: memref<128x640xbf16, #tpu.memory_space<vmem>>, %arg9: memref<1x640xf32, #tpu.memory_space<vmem>>, %arg10: memref<16x640xf32, #tpu.memory_space<vmem>>) attributes {dimension_semantics = [#tpu.dimension_semantics<arbitrary>], iteration_bounds = array<i64: 1>, scalar_prefetch = 0 : i64, scratch_operands = 0 : i64, tpu.core_type = #tpu.core_type<tc>, window_params = [{transform_indices = @transform_0, window_bounds = array<i64: 16, 32>}, {pipeline_mode = #tpu.pipeline_mode<synchronous>, transform_indices = @transform_1, window_bounds = array<i64: 32, 128>}, {pipeline_mode = #tpu.pipeline_mode<synchronous>, transform_indices = @transform_2, window_bounds = array<i64: 1, 128>}, {pipeline_mode = #tpu.pipeline_mode<synchronous>, transform_indices = @transform_3, window_bounds = array<i64: 128, 128>}, {pipeline_mode = #tpu.pipeline_mode<synchronous>, transform_indices = @transform_4, window_bounds = array<i64: 1, 128>}, {pipeline_mode = #tpu.pipeline_mode<synchronous>, transform_indices = @transform_5, window_bounds = array<i64: 128, 128>}, {pipeline_mode = #tpu.pipeline_mode<synchronous>, transform_indices = @transform_6, window_bounds = array<i64: 1, 128>}, {pipeline_mode = #tpu.pipeline_mode<synchronous>, transform_indices = @transform_7, window_bounds = array<i64: 128, 640>}, {pipeline_mode = #tpu.pipeline_mode<synchronous>, transform_indices = @transform_8, window_bounds = array<i64: 1, 640>}, {transform_indices = @transform_9, window_bounds = array<i64: 16, 640>}]} {
    %c0 = arith.constant 0 : index
    %c0_0 = arith.constant 0 : index
    %0 = vector.load %arg1[%c0, %c0_0] : memref<16x32xf32, #tpu.memory_space<vmem>>, vector<16x32xf32>
    %1 = arith.truncf %0 : vector<16x32xf32> to vector<16x32xbf16>
    %c0_1 = arith.constant 0 : index
    %c0_2 = arith.constant 0 : index
    %2 = vector.load %arg2[%c0_1, %c0_2] : memref<32x128xbf16, #tpu.memory_space<vmem>>, vector<32x128xbf16>
    %cst = arith.constant dense<0.000000e+00> : vector<16x128xf32>
    %3 = tpu.matmul %1, %2, %cst {dimension_numbers = #tpu.dot_dimension_numbers<[1], [0], [0], [1], [0, 0, 1, 1], [], []>} : vector<16x32xbf16>, vector<32x128xbf16>, vector<16x128xf32> -> vector<16x128xf32>
    %c0_3 = arith.constant 0 : index
    %c0_4 = arith.constant 0 : index
    %4 = vector.load %arg3[%c0_3, %c0_4] : memref<1x128xf32, #tpu.memory_space<vmem>>, vector<1x128xf32>
    %5 = vector.broadcast %4 : vector<1x128xf32> to vector<16x128xf32>
    %6 = arith.addf %3, %5 : vector<16x128xf32>
    %7 = math.tanh %6 : vector<16x128xf32>
    %8 = arith.truncf %7 : vector<16x128xf32> to vector<16x128xbf16>
    %c0_5 = arith.constant 0 : index
    %c0_6 = arith.constant 0 : index
    %9 = vector.load %arg4[%c0_5, %c0_6] : memref<128x128xbf16, #tpu.memory_space<vmem>>, vector<128x128xbf16>
    %cst_7 = arith.constant dense<0.000000e+00> : vector<16x128xf32>
    %10 = tpu.matmul %8, %9, %cst_7 {dimension_numbers = #tpu.dot_dimension_numbers<[1], [0], [0], [1], [0, 0, 1, 1], [], []>} : vector<16x128xbf16>, vector<128x128xbf16>, vector<16x128xf32> -> vector<16x128xf32>
    %c0_8 = arith.constant 0 : index
    %c0_9 = arith.constant 0 : index
    %11 = vector.load %arg5[%c0_8, %c0_9] : memref<1x128xf32, #tpu.memory_space<vmem>>, vector<1x128xf32>
    %12 = vector.broadcast %11 : vector<1x128xf32> to vector<16x128xf32>
    %13 = arith.addf %10, %12 : vector<16x128xf32>
    %14 = math.tanh %13 : vector<16x128xf32>
    %15 = arith.truncf %14 : vector<16x128xf32> to vector<16x128xbf16>
    %c0_10 = arith.constant 0 : index
    %c0_11 = arith.constant 0 : index
    %16 = vector.load %arg6[%c0_10, %c0_11] : memref<128x128xbf16, #tpu.memory_space<vmem>>, vector<128x128xbf16>
    %cst_12 = arith.constant dense<0.000000e+00> : vector<16x128xf32>
    %17 = tpu.matmul %15, %16, %cst_12 {dimension_numbers = #tpu.dot_dimension_numbers<[1], [0], [0], [1], [0, 0, 1, 1], [], []>} : vector<16x128xbf16>, vector<128x128xbf16>, vector<16x128xf32> -> vector<16x128xf32>
    %c0_13 = arith.constant 0 : index
    %c0_14 = arith.constant 0 : index
    %18 = vector.load %arg7[%c0_13, %c0_14] : memref<1x128xf32, #tpu.memory_space<vmem>>, vector<1x128xf32>
    %19 = vector.broadcast %18 : vector<1x128xf32> to vector<16x128xf32>
    %20 = arith.addf %17, %19 : vector<16x128xf32>
    %21 = math.tanh %20 : vector<16x128xf32>
    %22 = arith.truncf %21 : vector<16x128xf32> to vector<16x128xbf16>
    %c0_15 = arith.constant 0 : index
    %c0_16 = arith.constant 0 : index
    %23 = vector.load %arg8[%c0_15, %c0_16] : memref<128x640xbf16, #tpu.memory_space<vmem>>, vector<128x640xbf16>
    %cst_17 = arith.constant dense<0.000000e+00> : vector<16x640xf32>
    %24 = tpu.matmul %22, %23, %cst_17 {dimension_numbers = #tpu.dot_dimension_numbers<[1], [0], [0], [1], [0, 0, 1, 1], [], []>} : vector<16x128xbf16>, vector<128x640xbf16>, vector<16x640xf32> -> vector<16x640xf32>
    %c0_18 = arith.constant 0 : index
    %c0_19 = arith.constant 0 : index
    %25 = vector.load %arg9[%c0_18, %c0_19] : memref<1x640xf32, #tpu.memory_space<vmem>>, vector<1x640xf32>
    %26 = vector.broadcast %25 : vector<1x640xf32> to vector<16x640xf32>
    %27 = arith.addf %24, %26 : vector<16x640xf32>
    %c0_20 = arith.constant 0 : index
    %c0_21 = arith.constant 0 : index
    %28 = vector.load %arg10[%c0_20, %c0_21] : memref<16x640xf32, #tpu.memory_space<vmem>>, vector<16x640xf32>
    tpu.vector_store %arg10[%c0_20, %c0_21], %27 {strides = array<i32>} : memref<16x640xf32, #tpu.memory_space<vmem>>, vector<16x640xf32>,
    return
  }
  func.func @transform_0(%arg0: i32) -> (i32, i32) {
    %c0_i32 = arith.constant 0 : i32
    %c0_i32_0 = arith.constant 0 : i32
    return %arg0, %c0_i32 : i32, i32
  }
  func.func @transform_1(%arg0: i32) -> (i32, i32) {
    %c0_i32 = arith.constant 0 : i32
    %c0_i32_0 = arith.constant 0 : i32
    %c0_i32_1 = arith.constant 0 : i32
    return %c0_i32, %c0_i32_0 : i32, i32
  }
  func.func @transform_2(%arg0: i32) -> (i32, i32) {
    %c0_i32 = arith.constant 0 : i32
    %c0_i32_0 = arith.constant 0 : i32
    %c0_i32_1 = arith.constant 0 : i32
    return %c0_i32, %c0_i32_0 : i32, i32
  }
  func.func @transform_3(%arg0: i32) -> (i32, i32) {
    %c0_i32 = arith.constant 0 : i32
    %c0_i32_0 = arith.constant 0 : i32
    %c0_i32_1 = arith.constant 0 : i32
    return %c0_i32, %c0_i32_0 : i32, i32
  }
  func.func @transform_4(%arg0: i32) -> (i32, i32) {
    %c0_i32 = arith.constant 0 : i32
    %c0_i32_0 = arith.constant 0 : i32
    %c0_i32_1 = arith.constant 0 : i32
    return %c0_i32, %c0_i32_0 : i32, i32
  }
  func.func @transform_5(%arg0: i32) -> (i32, i32) {
    %c0_i32 = arith.constant 0 : i32
    %c0_i32_0 = arith.constant 0 : i32
    %c0_i32_1 = arith.constant 0 : i32
    return %c0_i32, %c0_i32_0 : i32, i32
  }
  func.func @transform_6(%arg0: i32) -> (i32, i32) {
    %c0_i32 = arith.constant 0 : i32
    %c0_i32_0 = arith.constant 0 : i32
    %c0_i32_1 = arith.constant 0 : i32
    return %c0_i32, %c0_i32_0 : i32, i32
  }
  func.func @transform_7(%arg0: i32) -> (i32, i32) {
    %c0_i32 = arith.constant 0 : i32
    %c0_i32_0 = arith.constant 0 : i32
    %c0_i32_1 = arith.constant 0 : i32
    return %c0_i32, %c0_i32_0 : i32, i32
  }
  func.func @transform_8(%arg0: i32) -> (i32, i32) {
    %c0_i32 = arith.constant 0 : i32
    %c0_i32_0 = arith.constant 0 : i32
    %c0_i32_1 = arith.constant 0 : i32
    return %c0_i32, %c0_i32_0 : i32, i32
  }
  func.func @transform_9(%arg0: i32) -> (i32, i32) {
    %c0_i32 = arith.constant 0 : i32
    %c0_i32_0 = arith.constant 0 : i32
    return %arg0, %c0_i32 : i32, i32
  }
}

</mosaic_0001>

<llo_original>
// kernel: tpu_custom_call.1
$region0: #{tpu_custom_call.1}
  #allocation0 [shape = 'u32[]', space=smem, size = 0x4, offset = 0x4, fixed_abs, tag = 'smem constant byte address 0x4 - core index']
  #allocation1 [shape = 'u32[72,128]{1,0:T(1,128)}', space=vmem, size = 0x9000, scoped, tag = 'internal scratch']
  %s0 = inlined_call_operand.hbm [shape: f32[16,32], index: 0, kind: input, shape index: {}]
  %s1 = inlined_call_operand.hbm [shape: bf16[32,128], index: 1, kind: input, shape index: {}]
  %s2 = inlined_call_operand.vmem [shape: f32[1,128], index: 2, kind: input, shape index: {}]
  %s3 = inlined_call_operand.hbm [shape: bf16[128,128], index: 3, kind: input, shape index: {}]
  %s4 = inlined_call_operand.vmem [shape: f32[1,128], index: 4, kind: input, shape index: {}]
  %s5 = inlined_call_operand.hbm [shape: bf16[128,128], index: 5, kind: input, shape index: {}]
  %s6 = inlined_call_operand.hbm [shape: f32[1,128], index: 6, kind: input, shape index: {}]
  %s7 = inlined_call_operand.hbm [shape: bf16[128,640], index: 7, kind: input, shape index: {}]
  %s8 = inlined_call_operand.vmem [shape: f32[1,640], index: 8, kind: input, shape index: {}]
  %s9 = inlined_call_operand.hbm [shape: f32[16,640], index: 9, kind: output, shape index: {}]
  %s10 = sld [smem:[#allocation0]]
  $region70: #{tpu_custom_call.1} parent=0
    _
  %s12 = ssub.s32 1, %s10
  %s13 = scalar_select 0, %s12, %s10
  $region1: #{tpu_custom_call.1} parent=0
    #allocation2 [shape = 'u8[8192]{0}', space=vmem, size = 0x2000, scoped, tag = 'input window, operand 0, single buffered']
    #allocation3 [shape = 's32[1]{0}', space=sflag, size = 0x4, scoped, tag = 'scoped memory for tpu_custom_call.1']
    #allocation4 [shape = 's32[1]{0}', space=sflag, size = 0x4, scoped, tag = 'scoped memory for tpu_custom_call.1']
    #allocation5 [shape = 'u8[8192]{0}', space=vmem, size = 0x2000, scoped, tag = 'input window, operand 1, single buffered']
    #allocation6 [shape = 's32[1]{0}', space=sflag, size = 0x4, scoped, tag = 'scoped memory for tpu_custom_call.1']
    #allocation7 [shape = 'u8[32768]{0}', space=vmem, size = 0x8000, scoped, tag = 'input window, operand 3, single buffered']
    #allocation8 [shape = 'u8[32768]{0}', space=vmem, size = 0x8000, scoped, tag = 'input window, operand 5, single buffered']
    #allocation9 [shape = 's32[1]{0}', space=sflag, size = 0x4, scoped, tag = 'scoped memory for tpu_custom_call.1']
    #allocation10 [shape = 'u8[512]{0}', space=vmem, size = 0x400, scoped, tag = 'input window, operand 6, single buffered']
    #allocation11 [shape = 'u8[163840]{0}', space=vmem, size = 0x28000, scoped, tag = 'input window, operand 7, single buffered']
    #allocation12 [shape = 's32[1]{0}', space=sflag, size = 0x4, scoped, tag = 'scoped memory for tpu_custom_call.1']
    #allocation13 [shape = 'u8[40960]{0}', space=vmem, size = 0xa000, scoped, tag = 'output window, operand 0, single buffered']
    %14 = vsyncpa [#allocation3], 0
    %15 = vsyncpa [#allocation6], 0
    %16 = vsyncpa [#allocation9], 0
    %17 = vsyncpa [#allocation12], 0
    %18 = vsyncpa [#allocation4], 0
    // Predicated region
    $region2: #{tpu_custom_call.1} parent=1 // pred_check
      _
    $region3: #{tpu_custom_call.1} parent=1 // pred_check_branch
      %20 = sbr.rel (0) target = $region5
    $region4: #{tpu_custom_call.1} parent=1 // pred_region
      %22 = vsyncadd [#allocation3], 0
      %s23 = sshll.u32 %s0, 4
      %s24 = int_to_ptr.hbm [resolvable:$true] %s23
      %s25 = sshll.u32 [#allocation2], 4
      %s26 = int_to_ptr.vmem [resolvable:$true] %s25
      %31 = dma.hbm_to_vmem [thread:$0]  %s24, 256, %s26, [#allocation3], 128, 128, 8
    $region5: #{tpu_custom_call.1} parent=1 // pred_fallthru
      _
    // Predicated region
    $region6: #{tpu_custom_call.1} parent=1 // pred_check
      _
    $region7: #{tpu_custom_call.1} parent=1 // pred_check_branch
      %33 = sbr.rel (0) target = $region9
    $region8: #{tpu_custom_call.1} parent=1 // pred_region
      %35 = vsyncadd [#allocation6], 0
      %s36 = sshll.u32 %s1, 4
      %s37 = int_to_ptr.hbm [resolvable:$true] %s36
      %s38 = sshll.u32 [#allocation5], 4
      %s39 = int_to_ptr.vmem [resolvable:$true] %s38
      %44 = dma.hbm_to_vmem [thread:$0]  %s37, 256, %s39, [#allocation6], 64, 64, 4
    $region9: #{tpu_custom_call.1} parent=1 // pred_fallthru
      _
    // Predicated region
    $region10: #{tpu_custom_call.1} parent=1 // pred_check
      _
    $region11: #{tpu_custom_call.1} parent=1 // pred_check_branch
      %46 = sbr.rel (0) target = $region13
    $region12: #{tpu_custom_call.1} parent=1 // pred_region
      _
    $region13: #{tpu_custom_call.1} parent=1 // pred_fallthru
      _
    // Predicated region
    $region14: #{tpu_custom_call.1} parent=1 // pred_check
      _
    $region15: #{tpu_custom_call.1} parent=1 // pred_check_branch
      %48 = sbr.rel (0) target = $region17
    $region16: #{tpu_custom_call.1} parent=1 // pred_region
      %50 = vsyncadd [#allocation6], 0
      %s51 = sshll.u32 %s3, 4
      %s52 = int_to_ptr.hbm [resolvable:$true] %s51
      %s53 = sshll.u32 [#allocation7], 4
      %s54 = int_to_ptr.vmem [resolvable:$true] %s53
      %59 = dma.hbm_to_vmem [thread:$0]  %s52, 1024, %s54, [#allocation6], 64, 64, 4
    $region17: #{tpu_custom_call.1} parent=1 // pred_fallthru
      _
    // Predicated region
    $region18: #{tpu_custom_call.1} parent=1 // pred_check
      _
    $region19: #{tpu_custom_call.1} parent=1 // pred_check_branch
      %61 = sbr.rel (0) target = $region21
    $region20: #{tpu_custom_call.1} parent=1 // pred_region
      _
    $region21: #{tpu_custom_call.1} parent=1 // pred_fallthru
      _
    // Predicated region
    $region22: #{tpu_custom_call.1} parent=1 // pred_check
      _
    $region23: #{tpu_custom_call.1} parent=1 // pred_check_branch
      %63 = sbr.rel (0) target = $region25
    $region24: #{tpu_custom_call.1} parent=1 // pred_region
      %65 = vsyncadd [#allocation9], 0
      %s66 = sshll.u32 %s5, 4
      %s67 = int_to_ptr.hbm [resolvable:$true] %s66
      %s68 = sshll.u32 [#allocation8], 4
      %s69 = int_to_ptr.vmem [resolvable:$true] %s68
      %74 = dma.hbm_to_vmem [thread:$0]  %s67, 1024, %s69, [#allocation9], 64, 64, 4
    $region25: #{tpu_custom_call.1} parent=1 // pred_fallthru
      _
    // Predicated region
    $region26: #{tpu_custom_call.1} parent=1 // pred_check
      _
    $region27: #{tpu_custom_call.1} parent=1 // pred_check_branch
      %76 = sbr.rel (0) target = $region29
    $region28: #{tpu_custom_call.1} parent=1 // pred_region
      %78 = vsyncadd [#allocation9], 0
      %s80 = sshll.u32 %s6, 4
      %s81 = int_to_ptr.hbm [resolvable:$true] %s80
      %s82 = sshll.u32 [#allocation10], 4
      %s83 = int_to_ptr.vmem [resolvable:$true] %s82
      %85 = dma.hbm_to_vmem [thread:$0]  %s81, 16, %s83, [#allocation9]
    $region29: #{tpu_custom_call.1} parent=1 // pred_fallthru
      _
    // Predicated region
    $region30: #{tpu_custom_call.1} parent=1 // pred_check
      _
    $region31: #{tpu_custom_call.1} parent=1 // pred_check_branch
      %87 = sbr.rel (0) target = $region33
    $region32: #{tpu_custom_call.1} parent=1 // pred_region
      %89 = vsyncadd [#allocation12], 0
      %s90 = sshll.u32 %s7, 4
      %s91 = int_to_ptr.hbm [resolvable:$true] %s90
      %s92 = sshll.u32 [#allocation11], 4
      %s93 = int_to_ptr.vmem [resolvable:$true] %s92
      %98 = dma.hbm_to_vmem [thread:$0]  %s91, 5120, %s93, [#allocation12], 320, 320, 20
    $region33: #{tpu_custom_call.1} parent=1 // pred_fallthru
      _
    // Predicated region
    $region34: #{tpu_custom_call.1} parent=1 // pred_check
      _
    $region35: #{tpu_custom_call.1} parent=1 // pred_check_branch
      %100 = sbr.rel (0) target = $region37
    $region36: #{tpu_custom_call.1} parent=1 // pred_region
      _
    $region37: #{tpu_custom_call.1} parent=1 // pred_fallthru
      _
    // Predicated region
    $region38: #{tpu_custom_call.1} parent=1 // pred_check
      _
    $region39: #{tpu_custom_call.1} parent=1 // pred_check_branch
      %102 = sbr.rel (0) target = $region41
    $region40: #{tpu_custom_call.1} parent=1 // pred_region
      %104 = dma.done [#allocation3], 256
    $region41: #{tpu_custom_call.1} parent=1 // pred_fallthru
      _
    // Predicated region
    $region42: #{tpu_custom_call.1} parent=1 // pred_check
      _
    $region43: #{tpu_custom_call.1} parent=1 // pred_check_branch
      %106 = sbr.rel (0) target = $region45
    $region44: #{tpu_custom_call.1} parent=1 // pred_region
      %108 = dma.done [#allocation6], 256
    $region45: #{tpu_custom_call.1} parent=1 // pred_fallthru
      _
    // Predicated region
    $region46: #{tpu_custom_call.1} parent=1 // pred_check
      _
    $region47: #{tpu_custom_call.1} parent=1 // pred_check_branch
      %110 = sbr.rel (0) target = $region49
    $region48: #{tpu_custom_call.1} parent=1 // pred_region
      %112 = dma.done [#allocation6], 1024
    $region49: #{tpu_custom_call.1} parent=1 // pred_fallthru
      _
    // Predicated region
    $region50: #{tpu_custom_call.1} parent=1 // pred_check
      _
    $region51: #{tpu_custom_call.1} parent=1 // pred_check_branch
      %114 = sbr.rel (0) target = $region53
    $region52: #{tpu_custom_call.1} parent=1 // pred_region
      %116 = dma.done [#allocation9], 1024
    $region53: #{tpu_custom_call.1} parent=1 // pred_fallthru
      _
    // Predicated region
    $region54: #{tpu_custom_call.1} parent=1 // pred_check
      _
    $region55: #{tpu_custom_call.1} parent=1 // pred_check_branch
      %118 = sbr.rel (0) target = $region57
    $region56: #{tpu_custom_call.1} parent=1 // pred_region
      %120 = dma.done [#allocation9], 16
    $region57: #{tpu_custom_call.1} parent=1 // pred_fallthru
      _
    // Predicated region
    $region58: #{tpu_custom_call.1} parent=1 // pred_check
      _
    $region59: #{tpu_custom_call.1} parent=1 // pred_check_branch
      %122 = sbr.rel (0) target = $region61
    $region60: #{tpu_custom_call.1} parent=1 // pred_region
      %124 = dma.done [#allocation12], 5120
    $region61: #{tpu_custom_call.1} parent=1 // pred_fallthru
      _
    %v126 = vld [vmem:[#allocation2] sm:$0xff]
    %v127 = vld [vmem:[#allocation2 + $0x8] sm:$0xff]
    %v128 = vpack.c.bf16 %v127, %v126
    %v129 = vld [vmem:[#allocation5] sm:$0xf]
    %v130 = vld [vmem:[#allocation5 + $0x4] sm:$0xf]
    %v131 = vld [vmem:[#allocation5 + $0x8] sm:$0xf]
    %v132 = vld [vmem:[#allocation5 + $0xc] sm:$0xf]
    %v133 = vld [vmem:[%s2] sm:$0x1]
    %v135 = vperm.slane %v133, 0
    %v141 = vunpack.c.l.b16 %v129
    %v142 = vunpack.c.l.b16 %v130
    %v143 = vunpack.c.l.b16 %v131
    %v144 = vunpack.c.l.b16 %v132
    %v145 = vpack.c.b16 %v142, %v141
    %v146 = vpack.c.b16 %v144, %v143
    %vm149 = vcmask 261120
    %v151 = vsel %vm149, %v128, 0
    %153 = vmatpush.bf16.msra.mxu0 0
    %154 = vmatpush.bf16.msra.mxu0 0
    %155 = vmatpush.bf16.msra.mxu0 0
    %156 = vmatpush.bf16.msra.mxu0 0
    %157 = vmatpush.bf16.msra.mxu0 0
    %158 = vmatpush.bf16.msra.mxu0 0
    %159 = vmatpush.bf16.msra.mxu0 %v146
    %160 = vmatpush.bf16.msra.mxu0 %v145
    %161 = vmatmul.bf16.gmra.mxu0 %v151
    %v162 = vpop.f32.mrf.mxu0
    %v163 = vadd.f32 %v135, %v162
    %v164 = vpop.f32.mrf.mxu0
    %v165 = vadd.f32 %v135, %v164
    %166 = vdwg.mxu0
    %v167 = vtanh.pop %v163
    %v168 = vtanh.pop %v165
    %v169 = vpack.c.bf16 %v168, %v167
    %v170 = vld [vmem:[#allocation7] sm:$0xf]
    %v171 = vld [vmem:[#allocation7 + $0x4] sm:$0xf]
    %v172 = vld [vmem:[#allocation7 + $0x8] sm:$0xf]
    %v173 = vld [vmem:[#allocation7 + $0xc] sm:$0xf]
    %v174 = vld [vmem:[#allocation7 + $0x10] sm:$0xf]
    %v175 = vld [vmem:[#allocation7 + $0x14] sm:$0xf]
    %v176 = vld [vmem:[#allocation7 + $0x18] sm:$0xf]
    %v177 = vld [vmem:[#allocation7 + $0x1c] sm:$0xf]
    %v178 = vld [vmem:[#allocation7 + $0x20] sm:$0xf]
    %v179 = vld [vmem:[#allocation7 + $0x24] sm:$0xf]
    %v180 = vld [vmem:[#allocation7 + $0x28] sm:$0xf]
    %v181 = vld [vmem:[#allocation7 + $0x2c] sm:$0xf]
    %v182 = vld [vmem:[#allocation7 + $0x30] sm:$0xf]
    %v183 = vld [vmem:[#allocation7 + $0x34] sm:$0xf]
    %v184 = vld [vmem:[#allocation7 + $0x38] sm:$0xf]
    %v185 = vld [vmem:[#allocation7 + $0x3c] sm:$0xf]
    %v186 = vld [vmem:[%s4] sm:$0x1]
    %v188 = vperm.slane %v186, 0
    %v206 = vunpack.c.l.b16 %v170
    %v207 = vunpack.c.l.b16 %v171
    %v208 = vunpack.c.l.b16 %v172
    %v209 = vunpack.c.l.b16 %v173
    %v210 = vunpack.c.l.b16 %v174
    %v211 = vunpack.c.l.b16 %v175
    %v212 = vunpack.c.l.b16 %v176
    %v213 = vunpack.c.l.b16 %v177
    %v214 = vunpack.c.l.b16 %v178
    %v215 = vunpack.c.l.b16 %v179
    %v216 = vunpack.c.l.b16 %v180
    %v217 = vunpack.c.l.b16 %v181
    %v218 = vunpack.c.l.b16 %v182
    %v219 = vunpack.c.l.b16 %v183
    %v220 = vunpack.c.l.b16 %v184
    %v221 = vunpack.c.l.b16 %v185
    %v222 = vpack.c.b16 %v207, %v206
    %v223 = vpack.c.b16 %v209, %v208
    %v224 = vpack.c.b16 %v211, %v210
    %v225 = vpack.c.b16 %v213, %v212
    %v226 = vpack.c.b16 %v215, %v214
    %v227 = vpack.c.b16 %v217, %v216
    %v228 = vpack.c.b16 %v219, %v218
    %v229 = vpack.c.b16 %v221, %v220
    %238 = vmatpush.bf16.msra.mxu0 %v229
    %239 = vmatpush.bf16.msra.mxu0 %v228
    %240 = vmatpush.bf16.msra.mxu0 %v227
    %241 = vmatpush.bf16.msra.mxu0 %v226
    %242 = vmatpush.bf16.msra.mxu0 %v225
    %243 = vmatpush.bf16.msra.mxu0 %v224
    %244 = vmatpush.bf16.msra.mxu0 %v223
    %245 = vmatpush.bf16.msra.mxu0 %v222
    %246 = vmatmul.bf16.gmra.mxu0 %v169
    %v247 = vpop.f32.mrf.mxu0
    %v248 = vadd.f32 %v188, %v247
    %v249 = vpop.f32.mrf.mxu0
    %v250 = vadd.f32 %v188, %v249
    %251 = vdwg.mxu0
    %v252 = vtanh.pop %v248
    %v253 = vtanh.pop %v250
    %v254 = vpack.c.bf16 %v253, %v252
    %v255 = vld [vmem:[#allocation8] sm:$0xf]
    %v256 = vld [vmem:[#allocation8 + $0x4] sm:$0xf]
    %v257 = vld [vmem:[#allocation8 + $0x8] sm:$0xf]
    %v258 = vld [vmem:[#allocation8 + $0xc] sm:$0xf]
    %v259 = vld [vmem:[#allocation8 + $0x10] sm:$0xf]
    %v260 = vld [vmem:[#allocation8 + $0x14] sm:$0xf]
    %v261 = vld [vmem:[#allocation8 + $0x18] sm:$0xf]
    %v262 = vld [vmem:[#allocation8 + $0x1c] sm:$0xf]
    %v263 = vld [vmem:[#allocation8 + $0x20] sm:$0xf]
    %v264 = vld [vmem:[#allocation8 + $0x24] sm:$0xf]
    %v265 = vld [vmem:[#allocation8 + $0x28] sm:$0xf]
    %v266 = vld [vmem:[#allocation8 + $0x2c] sm:$0xf]
    %v267 = vld [vmem:[#allocation8 + $0x30] sm:$0xf]
    %v268 = vld [vmem:[#allocation8 + $0x34] sm:$0xf]
    %v269 = vld [vmem:[#allocation8 + $0x38] sm:$0xf]
    %v270 = vld [vmem:[#allocation8 + $0x3c] sm:$0xf]
    %v271 = vld [vmem:[#allocation10] sm:$0x1]
    %v273 = vperm.slane %v271, 0
    %v291 = vunpack.c.l.b16 %v255
    %v292 = vunpack.c.l.b16 %v256
    %v293 = vunpack.c.l.b16 %v257
    %v294 = vunpack.c.l.b16 %v258
    %v295 = vunpack.c.l.b16 %v259
    %v296 = vunpack.c.l.b16 %v260
    %v297 = vunpack.c.l.b16 %v261
    %v298 = vunpack.c.l.b16 %v262
    %v299 = vunpack.c.l.b16 %v263
    %v300 = vunpack.c.l.b16 %v264
    %v301 = vunpack.c.l.b16 %v265
    %v302 = vunpack.c.l.b16 %v266
    %v303 = vunpack.c.l.b16 %v267
    %v304 = vunpack.c.l.b16 %v268
    %v305 = vunpack.c.l.b16 %v269
    %v306 = vunpack.c.l.b16 %v270
    %v307 = vpack.c.b16 %v292, %v291
    %v308 = vpack.c.b16 %v294, %v293
    %v309 = vpack.c.b16 %v296, %v295
    %v310 = vpack.c.b16 %v298, %v297
    %v311 = vpack.c.b16 %v300, %v299
    %v312 = vpack.c.b16 %v302, %v301
    %v313 = vpack.c.b16 %v304, %v303
    %v314 = vpack.c.b16 %v306, %v305
    %323 = vmatpush.bf16.msra.mxu0 %v314
    %324 = vmatpush.bf16.msra.mxu0 %v313
    %325 = vmatpush.bf16.msra.mxu0 %v312
    %326 = vmatpush.bf16.msra.mxu0 %v311
    %327 = vmatpush.bf16.msra.mxu0 %v310
    %328 = vmatpush.bf16.msra.mxu0 %v309
    %329 = vmatpush.bf16.msra.mxu0 %v308
    %330 = vmatpush.bf16.msra.mxu0 %v307
    %331 = vmatmul.bf16.gmra.mxu0 %v254
    %v332 = vpop.f32.mrf.mxu0
    %v333 = vadd.f32 %v273, %v332
    %v334 = vpop.f32.mrf.mxu0
    %v335 = vadd.f32 %v273, %v334
    %336 = vdwg.mxu0
    %v337 = vtanh.pop %v333
    %v338 = vtanh.pop %v335
    %v339 = vpack.c.bf16 %v338, %v337
    %v340 = vld [vmem:[#allocation11] sm:$0xff]
    %v341 = vld [vmem:[#allocation11 + $0x8] sm:$0xff]
    %v342 = vld [vmem:[#allocation11 + $0x10] sm:$0xf]
    %v343 = vld [vmem:[#allocation11 + $0x14] sm:$0xff]
    %v344 = vld [vmem:[#allocation11 + $0x1c] sm:$0xff]
    %v345 = vld [vmem:[#allocation11 + $0x24] sm:$0xf]
    %v346 = vld [vmem:[#allocation11 + $0x28] sm:$0xff]
    %v347 = vld [vmem:[#allocation11 + $0x30] sm:$0xff]
    %v348 = vld [vmem:[#allocation11 + $0x38] sm:$0xf]
    %v349 = vld [vmem:[#allocation11 + $0x3c] sm:$0xff]
    %v350 = vld [vmem:[#allocation11 + $0x44] sm:$0xff]
    %v351 = vld [vmem:[#allocation11 + $0x4c] sm:$0xf]
    %v352 = vld [vmem:[#allocation11 + $0x50] sm:$0xff]
    %v353 = vld [vmem:[#allocation11 + $0x58] sm:$0xff]
    %v354 = vld [vmem:[#allocation11 + $0x60] sm:$0xf]
    %v355 = vld [vmem:[#allocation11 + $0x64] sm:$0xff]
    %v356 = vld [vmem:[#allocation11 + $0x6c] sm:$0xff]
    %v357 = vld [vmem:[#allocation11 + $0x74] sm:$0xf]
    %v358 = vld [vmem:[#allocation11 + $0x78] sm:$0xff]
    %v359 = vld [vmem:[#allocation11 + $0x80] sm:$0xff]
    %v360 = vld [vmem:[#allocation11 + $0x88] sm:$0xf]
    %v361 = vld [vmem:[#allocation11 + $0x8c] sm:$0xff]
    %v362 = vld [vmem:[#allocation11 + $0x94] sm:$0xff]
    %v363 = vld [vmem:[#allocation11 + $0x9c] sm:$0xf]
    %v364 = vld [vmem:[#allocation11 + $0xa0] sm:$0xff]
    %v365 = vld [vmem:[#allocation11 + $0xa8] sm:$0xff]
    %v366 = vld [vmem:[#allocation11 + $0xb0] sm:$0xf]
    %v367 = vld [vmem:[#allocation11 + $0xb4] sm:$0xff]
    %v368 = vld [vmem:[#allocation11 + $0xbc] sm:$0xff]
    %v369 = vld [vmem:[#allocation11 + $0xc4] sm:$0xf]
    %v370 = vld [vmem:[#allocation11 + $0xc8] sm:$0xff]
    %v371 = vld [vmem:[#allocation11 + $0xd0] sm:$0xff]
    %v372 = vld [vmem:[#allocation11 + $0xd8] sm:$0xf]
    %v373 = vld [vmem:[#allocation11 + $0xdc] sm:$0xff]
    %v374 = vld [vmem:[#allocation11 + $0xe4] sm:$0xff]
    %v375 = vld [vmem:[#allocation11 + $0xec] sm:$0xf]
    %v376 = vld [vmem:[#allocation11 + $0xf0] sm:$0xff]
    %v377 = vld [vmem:[#allocation11 + $0xf8] sm:$0xff]
    %v378 = vld [vmem:[#allocation11 + $0x100] sm:$0xf]
    %v379 = vld [vmem:[#allocation11 + $0x104] sm:$0xff]
    %v380 = vld [vmem:[#allocation11 + $0x10c] sm:$0xff]
    %v381 = vld [vmem:[#allocation11 + $0x114] sm:$0xf]
    %v382 = vld [vmem:[#allocation11 + $0x118] sm:$0xff]
    %v383 = vld [vmem:[#allocation11 + $0x120] sm:$0xff]
    %v384 = vld [vmem:[#allocation11 + $0x128] sm:$0xf]
    %v385 = vld [vmem:[#allocation11 + $0x12c] sm:$0xff]
    %v386 = vld [vmem:[#allocation11 + $0x134] sm:$0xff]
    %v387 = vld [vmem:[#allocation11 + $0x13c] sm:$0xf]
    %v388 = vld [vmem:[%s8] sm:$0x1f]
    %v390 = vperm.slane %v388, 0
    %v391 = vperm.slane %v388, 1
    %v392 = vperm.slane %v388, 2
    %v393 = vperm.slane %v388, 3
    %v394 = vperm.slane %v388, 4
    %v448 = vunpack.c.l.b16 %v340
    %v449 = vunpack.c.h.b16 %v340
    %v450 = vunpack.c.l.b16 %v341
    %v451 = vunpack.c.h.b16 %v341
    %v452 = vunpack.c.l.b16 %v342
    %v453 = vunpack.c.l.b16 %v343
    %v454 = vunpack.c.h.b16 %v343
    %v455 = vunpack.c.l.b16 %v344
    %v456 = vunpack.c.h.b16 %v344
    %v457 = vunpack.c.l.b16 %v345
    %v458 = vunpack.c.l.b16 %v346
    %v459 = vunpack.c.h.b16 %v346
    %v460 = vunpack.c.l.b16 %v347
    %v461 = vunpack.c.h.b16 %v347
    %v462 = vunpack.c.l.b16 %v348
    %v463 = vunpack.c.l.b16 %v349
    %v464 = vunpack.c.h.b16 %v349
    %v465 = vunpack.c.l.b16 %v350
    %v466 = vunpack.c.h.b16 %v350
    %v467 = vunpack.c.l.b16 %v351
    %v468 = vunpack.c.l.b16 %v352
    %v469 = vunpack.c.h.b16 %v352
    %v470 = vunpack.c.l.b16 %v353
    %v471 = vunpack.c.h.b16 %v353
    %v472 = vunpack.c.l.b16 %v354
    %v473 = vunpack.c.l.b16 %v355
    %v474 = vunpack.c.h.b16 %v355
    %v475 = vunpack.c.l.b16 %v356
    %v476 = vunpack.c.h.b16 %v356
    %v477 = vunpack.c.l.b16 %v357
    %v478 = vunpack.c.l.b16 %v358
    %v479 = vunpack.c.h.b16 %v358
    %v480 = vunpack.c.l.b16 %v359
    %v481 = vunpack.c.h.b16 %v359
    %v482 = vunpack.c.l.b16 %v360
    %v483 = vunpack.c.l.b16 %v361
    %v484 = vunpack.c.h.b16 %v361
    %v485 = vunpack.c.l.b16 %v362
    %v486 = vunpack.c.h.b16 %v362
    %v487 = vunpack.c.l.b16 %v363
    %v488 = vunpack.c.l.b16 %v364
    %v489 = vunpack.c.h.b16 %v364
    %v490 = vunpack.c.l.b16 %v365
    %v491 = vunpack.c.h.b16 %v365
    %v492 = vunpack.c.l.b16 %v366
    %v493 = vunpack.c.l.b16 %v367
    %v494 = vunpack.c.h.b16 %v367
    %v495 = vunpack.c.l.b16 %v368
    %v496 = vunpack.c.h.b16 %v368
    %v497 = vunpack.c.l.b16 %v369
    %v498 = vunpack.c.l.b16 %v370
    %v499 = vunpack.c.h.b16 %v370
    %v500 = vunpack.c.l.b16 %v371
    %v501 = vunpack.c.h.b16 %v371
    %v502 = vunpack.c.l.b16 %v372
    %v503 = vunpack.c.l.b16 %v373
    %v504 = vunpack.c.h.b16 %v373
    %v505 = vunpack.c.l.b16 %v374
    %v506 = vunpack.c.h.b16 %v374
    %v507 = vunpack.c.l.b16 %v375
    %v508 = vunpack.c.l.b16 %v376
    %v509 = vunpack.c.h.b16 %v376
    %v510 = vunpack.c.l.b16 %v377
    %v511 = vunpack.c.h.b16 %v377
    %v512 = vunpack.c.l.b16 %v378
    %v513 = vunpack.c.l.b16 %v379
    %v514 = vunpack.c.h.b16 %v379
    %v515 = vunpack.c.l.b16 %v380
    %v516 = vunpack.c.h.b16 %v380
    %v517 = vunpack.c.l.b16 %v381
    %v518 = vunpack.c.l.b16 %v382
    %v519 = vunpack.c.h.b16 %v382
    %v520 = vunpack.c.l.b16 %v383
    %v521 = vunpack.c.h.b16 %v383
    %v522 = vunpack.c.l.b16 %v384
    %v523 = vunpack.c.l.b16 %v385
    %v524 = vunpack.c.h.b16 %v385
    %v525 = vunpack.c.l.b16 %v386
    %v526 = vunpack.c.h.b16 %v386
    %v527 = vunpack.c.l.b16 %v387
    %v528 = vpack.c.b16 %v453, %v448
    %v529 = vpack.c.b16 %v454, %v449
    %v530 = vpack.c.b16 %v455, %v450
    %v531 = vpack.c.b16 %v456, %v451
    %v532 = vpack.c.b16 %v457, %v452
    %v533 = vpack.c.b16 %v463, %v458
    %v534 = vpack.c.b16 %v464, %v459
    %v535 = vpack.c.b16 %v465, %v460
    %v536 = vpack.c.b16 %v466, %v461
    %v537 = vpack.c.b16 %v467, %v462
    %v538 = vpack.c.b16 %v473, %v468
    %v539 = vpack.c.b16 %v474, %v469
    %v540 = vpack.c.b16 %v475, %v470
    %v541 = vpack.c.b16 %v476, %v471
    %v542 = vpack.c.b16 %v477, %v472
    %v543 = vpack.c.b16 %v483, %v478
    %v544 = vpack.c.b16 %v484, %v479
    %v545 = vpack.c.b16 %v485, %v480
    %v546 = vpack.c.b16 %v486, %v481
    %v547 = vpack.c.b16 %v487, %v482
    %v548 = vpack.c.b16 %v493, %v488
    %v549 = vpack.c.b16 %v494, %v489
    %v550 = vpack.c.b16 %v495, %v490
    %v551 = vpack.c.b16 %v496, %v491
    %v552 = vpack.c.b16 %v497, %v492
    %v553 = vpack.c.b16 %v503, %v498
    %v554 = vpack.c.b16 %v504, %v499
    %v555 = vpack.c.b16 %v505, %v500
    %v556 = vpack.c.b16 %v506, %v501
    %v557 = vpack.c.b16 %v507, %v502
    %v558 = vpack.c.b16 %v513, %v508
    %v559 = vpack.c.b16 %v514, %v509
    %v560 = vpack.c.b16 %v515, %v510
    %v561 = vpack.c.b16 %v516, %v511
    %v562 = vpack.c.b16 %v517, %v512
    %v563 = vpack.c.b16 %v523, %v518
    %v564 = vpack.c.b16 %v524, %v519
    %v565 = vpack.c.b16 %v525, %v520
    %v566 = vpack.c.b16 %v526, %v521
    %v567 = vpack.c.b16 %v527, %v522
    %608 = vmatpush.bf16.msra.mxu0 %v563
    %609 = vmatpush.bf16.msra.mxu0 %v558
    %610 = vmatpush.bf16.msra.mxu0 %v553
    %611 = vmatpush.bf16.msra.mxu0 %v548
    %612 = vmatpush.bf16.msra.mxu0 %v543
    %613 = vmatpush.bf16.msra.mxu0 %v538
    %614 = vmatpush.bf16.msra.mxu0 %v533
    %615 = vmatpush.bf16.msra.mxu0 %v528
    %616 = vmatmul.bf16.gmra.mxu0 %v339
    %v617 = vpop.f32.mrf.mxu0
    %v618 = vadd.f32 %v390, %v617
    %v619 = vpop.f32.mrf.mxu0
    %v620 = vadd.f32 %v390, %v619
    %621 = vdwg.mxu0
    %622 = vmatpush.bf16.msra.mxu0 %v564
    %623 = vmatpush.bf16.msra.mxu0 %v559
    %624 = vmatpush.bf16.msra.mxu0 %v554
    %625 = vmatpush.bf16.msra.mxu0 %v549
    %626 = vmatpush.bf16.msra.mxu0 %v544
    %627 = vmatpush.bf16.msra.mxu0 %v539
    %628 = vmatpush.bf16.msra.mxu0 %v534
    %629 = vmatpush.bf16.msra.mxu0 %v529
    %630 = vmatmul.bf16.gmra.mxu0 %v339
    %v631 = vpop.f32.mrf.mxu0
    %v632 = vadd.f32 %v391, %v631
    %v633 = vpop.f32.mrf.mxu0
    %v634 = vadd.f32 %v391, %v633
    %635 = vdwg.mxu0
    %636 = vmatpush.bf16.msra.mxu0 %v565
    %637 = vmatpush.bf16.msra.mxu0 %v560
    %638 = vmatpush.bf16.msra.mxu0 %v555
    %639 = vmatpush.bf16.msra.mxu0 %v550
    %640 = vmatpush.bf16.msra.mxu0 %v545
    %641 = vmatpush.bf16.msra.mxu0 %v540
    %642 = vmatpush.bf16.msra.mxu0 %v535
    %643 = vmatpush.bf16.msra.mxu0 %v530
    %644 = vmatmul.bf16.gmra.mxu0 %v339
    %v645 = vpop.f32.mrf.mxu0
    %v646 = vadd.f32 %v392, %v645
    %v647 = vpop.f32.mrf.mxu0
    %v648 = vadd.f32 %v392, %v647
    %649 = vdwg.mxu0
    %650 = vmatpush.bf16.msra.mxu0 %v566
    %651 = vmatpush.bf16.msra.mxu0 %v561
    %652 = vmatpush.bf16.msra.mxu0 %v556
    %653 = vmatpush.bf16.msra.mxu0 %v551
    %654 = vmatpush.bf16.msra.mxu0 %v546
    %655 = vmatpush.bf16.msra.mxu0 %v541
    %656 = vmatpush.bf16.msra.mxu0 %v536
    %657 = vmatpush.bf16.msra.mxu0 %v531
    %658 = vmatmul.bf16.gmra.mxu0 %v339
    %v659 = vpop.f32.mrf.mxu0
    %v660 = vadd.f32 %v393, %v659
    %v661 = vpop.f32.mrf.mxu0
    %v662 = vadd.f32 %v393, %v661
    %663 = vdwg.mxu0
    %664 = vmatpush.bf16.msra.mxu0 %v567
    %665 = vmatpush.bf16.msra.mxu0 %v562
    %666 = vmatpush.bf16.msra.mxu0 %v557
    %667 = vmatpush.bf16.msra.mxu0 %v552
    %668 = vmatpush.bf16.msra.mxu0 %v547
    %669 = vmatpush.bf16.msra.mxu0 %v542
    %670 = vmatpush.bf16.msra.mxu0 %v537
    %671 = vmatpush.bf16.msra.mxu0 %v532
    %672 = vmatmul.bf16.gmra.mxu0 %v339
    %v673 = vpop.f32.mrf.mxu0
    %v674 = vadd.f32 %v394, %v673
    %v675 = vpop.f32.mrf.mxu0
    %v676 = vadd.f32 %v394, %v675
    %677 = vdwg.mxu0
    %678 = vst [vmem:[#allocation13] sm:$0xff] %v618
    %679 = vst [vmem:[#allocation13 + $0x8] sm:$0xff] %v632
    %680 = vst [vmem:[#allocation13 + $0x10] sm:$0xff] %v646
    %681 = vst [vmem:[#allocation13 + $0x18] sm:$0xff] %v660
    %682 = vst [vmem:[#allocation13 + $0x20] sm:$0xff] %v674
    %683 = vst [vmem:[#allocation13 + $0x28] sm:$0xff] %v620
    %684 = vst [vmem:[#allocation13 + $0x30] sm:$0xff] %v634
    %685 = vst [vmem:[#allocation13 + $0x38] sm:$0xff] %v648
    %686 = vst [vmem:[#allocation13 + $0x40] sm:$0xff] %v662
    %687 = vst [vmem:[#allocation13 + $0x48] sm:$0xff] %v676
    // Predicated region
    $region62: #{tpu_custom_call.1} parent=1 // pred_check
      _
    $region63: #{tpu_custom_call.1} parent=1 // pred_check_branch
      %689 = sbr.rel (0) target = $region65
    $region64: #{tpu_custom_call.1} parent=1 // pred_region
      %691 = vsyncadd [#allocation4], 0
      %s692 = sshll.u32 [#allocation13], 4
      %s693 = int_to_ptr.vmem [resolvable:$true] %s692
      %s694 = sshll.u32 %s9, 4
      %s695 = int_to_ptr.hbm [resolvable:$true] %s694
      %700 = dma.vmem_to_hbm [thread:$0]  %s693, 1280, %s695, [#allocation4], 640, 640, 40
    $region65: #{tpu_custom_call.1} parent=1 // pred_fallthru
      _
    // Predicated region
    $region66: #{tpu_custom_call.1} parent=1 // pred_check
      _
    $region67: #{tpu_custom_call.1} parent=1 // pred_check_branch
      %702 = sbr.rel (0) target = $region69
    $region68: #{tpu_custom_call.1} parent=1 // pred_region
      %704 = dma.done [#allocation4], 1280
    $region69: #{tpu_custom_call.1} parent=1 // pred_fallthru
      _
    %705 = vsyncpa [#allocation3], 1
    %706 = vsyncpa [#allocation6], 1
    %707 = vsyncpa [#allocation9], 1
    %708 = vsyncpa [#allocation12], 1
    %709 = vsyncpa [#allocation4], 1

</llo_original>
